<compile_context>
chip_gen: v6e
topology: v6e:2x2x1
jax: 0.10.0
libtpu: 0.0.40
codegen_flags: <defaults>
</compile_context>

<pallas_src>
import functools

import jax
import jax.numpy as jnp
from jax.experimental import pallas as pl
from jax.experimental.pallas import tpu as pltpu

LANE = 128
SUB = 8
CHUNK = SUB * LANE          # 1024 elements = one (8, 128) f32 vreg tile
MAX_TILE_ROWS = 8192        # (8192, 128) f32 block = 4 MiB per input


def _dice_sums_kernel(thr_ref, logits_ref, target_ref, inter_ref, union_ref,
                      *, tile_rows, num_blocks, last_rows):
    """Streaming reduction: accumulates sum(X*Y) and sum(X)+sum(Y).

    Grid = (num_blocks,) over row-blocks of the [rows, 128] bulk.  Outputs are
    two resident (8, 128) f32 accumulators (P3 pattern); the host sums them.
    """
    i = pl.program_id(0)

    @pl.when(i == 0)
    def _init():
        inter_ref[...] = jnp.zeros_like(inter_ref)
        union_ref[...] = jnp.zeros_like(union_ref)

    thr = thr_ref[0]                      # threshold in logit space (f32, SMEM)

    def accum(nrows):
        # Static slice of the valid rows of this block (nrows is a Python int,
        # always a multiple of 8), upcast in-kernel from the HBM dtype.
        lg = logits_ref[0:nrows, :].astype(jnp.float32)
        y = target_ref[0:nrows, :].astype(jnp.float32)
        # X = (sigmoid(logits) >= t)  <=>  logits >= logit(t)
        x = (lg >= thr).astype(jnp.float32)
        # Fold row-tiles: (nrows,128) -> (nrows/8, 8, 128), sum over the tile
        # axis -> plain (8,128) vector adds, no XLU reduce, no broadcast.
        inter_ref[...] += (x * y).reshape(nrows // SUB, SUB, LANE).sum(axis=0)
        union_ref[...] += (x + y).reshape(nrows // SUB, SUB, LANE).sum(axis=0)

    if last_rows == tile_rows:            # every block is full: single fast path
        accum(tile_rows)
    elif num_blocks == 1:                 # single partial block
        accum(last_rows)
    else:                                 # uneven grid: only the last block differs
        @pl.when(i < num_blocks - 1)
        def _full():
            accum(tile_rows)

        @pl.when(i == num_blocks - 1)
        def _partial():
            accum(last_rows)


@jax.jit
def dice_partial_sums(logits, target, threshold=0.5):
    """Returns a (2,) f32 array: [sum(X*Y), sum(X) + sum(Y)] for one batch."""
    assert logits.shape == target.shape, (logits.shape, target.shape)
    n = logits.size
    lf = logits.reshape(-1)
    yf = target.reshape(-1)

    # Threshold in logit space (sigmoid is monotone => exact equivalence).
    # TODO(synk): threshold >= 1.0 maps to +inf so X == 0 everywhere, while the
    # PyTorch reference gets X == 1 where f32 sigmoid saturates to exactly 1.0.
    t = jnp.asarray(threshold, jnp.float32)
    thr = jnp.where(t <= 0.0, -jnp.inf,
                    jnp.where(t >= 1.0, jnp.inf, jnp.log(t / (1.0 - t))))

    inter = jnp.float32(0.0)
    union = jnp.float32(0.0)

    n_bulk = (n // CHUNK) * CHUNK         # multiple of 8*128
    rows = n_bulk // LANE                 # multiple of 8

    if rows > 0:
        # Common case (n % 1024 == 0): zero-copy reshape of the full tensor.
        # Ragged case: the bulk prefix slice may materialize one copy in XLA,
        # but the old full-tensor pad (extra write of every byte) is gone and
        # the kernel stays completely mask-free.
        lb = (lf if n_bulk == n else lf[:n_bulk]).reshape(rows, LANE)
        yb = (yf if n_bulk == n else yf[:n_bulk]).reshape(rows, LANE)

        tile_rows = rows if rows <= MAX_TILE_ROWS else MAX_TILE_ROWS
        num_blocks = pl.cdiv(rows, tile_rows)
        last_rows = rows - (num_blocks - 1) * tile_rows   # multiple of 8

        kernel = functools.partial(_dice_sums_kernel, tile_rows=tile_rows,
                                   num_blocks=num_blocks, last_rows=last_rows)

        in_spec = pl.BlockSpec((tile_rows, LANE), lambda i, thr_ref: (i, 0))
        out_spec = pl.BlockSpec((SUB, LANE), lambda i, thr_ref: (0, 0))
        acc_shape = jax.ShapeDtypeStruct((SUB, LANE), jnp.float32)

        bytes_accessed = (n_bulk * (lb.dtype.itemsize + yb.dtype.itemsize)
                          + 2 * SUB * LANE * 4)
        inter_acc, union_acc = pl.pallas_call(
            kernel,
            out_shape=(acc_shape, acc_shape),
            grid_spec=pltpu.PrefetchScalarGridSpec(
                num_scalar_prefetch=1,
                grid=(num_blocks,),
                in_specs=[in_spec, in_spec],
                out_specs=[out_spec, out_spec],
            ),
            compiler_params=pltpu.CompilerParams(
                dimension_semantics=("arbitrary",),
                vmem_limit_bytes=32 * 1024 * 1024,
            ),
            cost_estimate=pl.CostEstimate(flops=6 * n_bulk, transcendentals=0,
                                          bytes_accessed=bytes_accessed),
        )(thr.reshape(1), lb, yb)
        inter = inter + jnp.sum(inter_acc)
        union = union + jnp.sum(union_acc)

    if n_bulk < n:                        # ragged tail: < 1024 elements, plain JAX
        lt = lf[n_bulk:].astype(jnp.float32)
        yt = yf[n_bulk:].astype(jnp.float32)
        xt = (lt >= thr).astype(jnp.float32)
        inter = inter + jnp.sum(xt * yt)
        union = union + jnp.sum(xt) + jnp.sum(yt)

    return jnp.stack([inter, union])


class GlobalDiceCoefficientWithLogitsForPPE:
    """Python-side state machine mirroring the PyTorch module.

    Partial sums are accumulated on device; the host sync (and metric division)
    only happens when is_last_batch=True, avoiding per-batch blocking .item().
    """

    def __init__(self, report_name: str, threshold: float = 0.5):
        self.report_name = report_name
        self.threshold = threshold
        self.intersection = 0.0
        self.union = 0.0
        self.last_report = None
        self._sums = jnp.zeros((2,), jnp.float32)   # [intersection, union]

    def forward(self, batch, model_output, is_last_batch: bool):
        self._sums = self._sums + dice_partial_sums(
            model_output, batch["target"], self.threshold)
        if is_last_batch:
            inter, union = (float(v) for v in jax.device_get(self._sums))
            self.intersection += inter
            self.union += union
            final_metric = 2 * self.intersection / max(self.union, 1e-07)
            # TODO(synk): ppe.reporting.report has no JAX/Pallas equivalent; the
            # metric is stored on the object instead of being reported.
            self.last_report = {self.report_name: final_metric}
            self.intersection = 0.0
            self.union = 0.0
            self._sums = jnp.zeros((2,), jnp.float32)

    __call__ = forward


if __name__ == "__main__":
    key = jax.random.PRNGKey(0)
    ks = jax.random.split(key, 8)

    def make_inputs(k1, k2, shape, logit_dtype=jnp.float32,
                    target_dtype=jnp.float32):
        # Quantize logits to k/8 + 1/16 so no value sits within float rounding
        # of the decision boundary (threshold 0.5 <=> logit 0).  |logit| >=
        # 1/16, and bf16 rounding preserves the sign, so the logit-space
        # compare matches the sigmoid reference exactly (deterministic test).
        logits = jnp.round(jax.random.normal(k1, shape) * 8.0) / 8.0 + 0.0625
        target = (jax.random.uniform(k2, shape) > 0.5)
        return logits.astype(logit_dtype), target.astype(target_dtype)

    def ref_sums(logits, target, threshold=0.5):
        x = (jax.nn.sigmoid(logits.astype(jnp.float32)) >= threshold
             ).astype(jnp.float32)
        y = target.astype(jnp.float32)
        return float(jnp.sum(x * y)), float(jnp.sum(x) + jnp.sum(y))

    def check(out, ref, atol=0.5):
        oi, ou = (float(v) for v in out)
        ri, ru = ref
        assert abs(oi - ri) <= atol, (oi, ri)
        assert abs(ou - ru) <= atol, (ou, ru)

    # 1) Small NCHW batch (single full block, zero-copy n % 1024 == 0 path).
    la, ta = make_inputs(ks[0], ks[1], (2, 4, 16, 16))
    out_a = dice_partial_sums(la, ta, 0.5)
    jax.block_until_ready(out_a)
    check(out_a, ref_sums(la, ta))

    # 2) Ragged element count (n % 1024 != 0 -> tiny plain-JAX tail).
    lb_, tb_ = make_inputs(ks[2], ks[3], (3, 5, 7, 11))
    out_b = dice_partial_sums(lb_, tb_, 0.5)
    jax.block_until_ready(out_b)
    check(out_b, ref_sums(lb_, tb_))

    # 3) Larger single-block case with narrow HBM dtypes (bf16 in, f32 in-kernel).
    lc, tc = make_inputs(ks[4], ks[5], (3, 4, 256, 256),
                         logit_dtype=jnp.bfloat16, target_dtype=jnp.bfloat16)
    out_c = dice_partial_sums(lc, tc, 0.5)
    jax.block_until_ready(out_c)
    check(out_c, ref_sums(lc, tc))

    # 4) Multi-block grid (8192-row tiles) with a partial last block: exercises
    #    both pl.when paths of the kernel.
    ld, td = make_inputs(ks[6], ks[7], (2, 3, 512, 512))
    out_d = dice_partial_sums(ld, td, 0.5)
    jax.block_until_ready(out_d)
    check(out_d, ref_sums(ld, td))

    # 5) Stateful metric over two "batches" (second is the last batch).
    metric = GlobalDiceCoefficientWithLogitsForPPE("dice", threshold=0.5)
    metric({"target": ta}, la, is_last_batch=False)
    metric({"target": tb_}, lb_, is_last_batch=True)
    assert metric.last_report is not None
    ra = ref_sums(la, ta)
    rb = ref_sums(lb_, tb_)
    expected = 2 * (ra[0] + rb[0]) / max(ra[1] + rb[1], 1e-07)
    assert abs(metric.last_report["dice"] - expected) <= 1e-4
    # State must be reset after the last batch.
    assert metric.intersection == 0.0 and metric.union == 0.0

    print("KERNEL_OK")
</pallas_src>

<mosaic_0001>
module attributes {stable_mosaic.version = 11 : i64} {
  func.func @_dice_sums_kernel(%arg0: i32, %arg1: memref<1xf32, #tpu.memory_space<smem>>, %arg2: memref<16x128xf32, #tpu.memory_space<vmem>>, %arg3: memref<16x128xf32, #tpu.memory_space<vmem>>, %arg4: memref<8x128xf32, #tpu.memory_space<vmem>>, %arg5: memref<8x128xf32, #tpu.memory_space<vmem>>) attributes {dimension_semantics = [#tpu.dimension_semantics<arbitrary>], iteration_bounds = array<i64: 1>, scalar_prefetch = 1 : i64, scratch_operands = 0 : i64, tpu.core_type = #tpu.core_type<tc>, window_params = [{transform_indices = @transform_0, window_bounds = array<i64: 16, 128>}, {transform_indices = @transform_1, window_bounds = array<i64: 16, 128>}, {pipeline_mode = #tpu.pipeline_mode<synchronous>, transform_indices = @transform_2, window_bounds = array<i64: 8, 128>}, {pipeline_mode = #tpu.pipeline_mode<synchronous>, transform_indices = @transform_3, window_bounds = array<i64: 8, 128>}]} {
    %c0_i32 = arith.constant 0 : i32
    %0 = arith.cmpi eq, %arg0, %c0_i32 : i32
    %1 = arith.extui %0 : i1 to i32
    %c0_i32_0 = arith.constant 0 : i32
    %2 = arith.cmpi ne, %1, %c0_i32_0 : i32
    scf.if %2 {
      %cst_14 = arith.constant 0.000000e+00 : f32
      %22 = vector.broadcast %cst_14 : f32 to vector<8x128xf32>
      %c0_15 = arith.constant 0 : index
      %c0_16 = arith.constant 0 : index
      %23 = vector.load %arg4[%c0_15, %c0_16] : memref<8x128xf32, #tpu.memory_space<vmem>>, vector<8x128xf32>
      tpu.vector_store %arg4[%c0_15, %c0_16], %22 {strides = array<i32>} : memref<8x128xf32, #tpu.memory_space<vmem>>, vector<8x128xf32>,
      %cst_17 = arith.constant 0.000000e+00 : f32
      %24 = vector.broadcast %cst_17 : f32 to vector<8x128xf32>
      %c0_18 = arith.constant 0 : index
      %c0_19 = arith.constant 0 : index
      %25 = vector.load %arg5[%c0_18, %c0_19] : memref<8x128xf32, #tpu.memory_space<vmem>>, vector<8x128xf32>
      tpu.vector_store %arg5[%c0_18, %c0_19], %24 {strides = array<i32>} : memref<8x128xf32, #tpu.memory_space<vmem>>, vector<8x128xf32>,
    } else {
    }
    %c0 = arith.constant 0 : index
    %3 = memref.load %arg1[%c0] : memref<1xf32, #tpu.memory_space<smem>>
    %c0_1 = arith.constant 0 : index
    %c0_2 = arith.constant 0 : index
    %4 = vector.load %arg2[%c0_1, %c0_2] : memref<16x128xf32, #tpu.memory_space<vmem>>, vector<16x128xf32>
    %c0_3 = arith.constant 0 : index
    %c0_4 = arith.constant 0 : index
    %5 = vector.load %arg3[%c0_3, %c0_4] : memref<16x128xf32, #tpu.memory_space<vmem>>, vector<16x128xf32>
    %6 = vector.broadcast %3 : f32 to vector<16x128xf32>
    %7 = arith.cmpf oge, %4, %6 : vector<16x128xf32>
    %8 = arith.extui %7 : vector<16x128xi1> to vector<16x128xi32>
    %9 = arith.sitofp %8 : vector<16x128xi32> to vector<16x128xf32>
    %c0_5 = arith.constant 0 : index
    %c0_6 = arith.constant 0 : index
    %10 = vector.load %arg4[%c0_5, %c0_6] : memref<8x128xf32, #tpu.memory_space<vmem>>, vector<8x128xf32>
    %11 = arith.mulf %9, %5 : vector<16x128xf32>
    %12 = vector.shape_cast %11 : vector<16x128xf32> to vector<2x8x128xf32>
    %cst = arith.constant dense<0.000000e+00> : vector<8x128xf32>
    %13 = vector.multi_reduction <add>, %12, %cst [0] : vector<2x8x128xf32> to vector<8x128xf32>
    %14 = arith.addf %10, %13 : vector<8x128xf32>
    %c0_7 = arith.constant 0 : index
    %c0_8 = arith.constant 0 : index
    %15 = vector.load %arg4[%c0_7, %c0_8] : memref<8x128xf32, #tpu.memory_space<vmem>>, vector<8x128xf32>
    tpu.vector_store %arg4[%c0_7, %c0_8], %14 {strides = array<i32>} : memref<8x128xf32, #tpu.memory_space<vmem>>, vector<8x128xf32>,
    %c0_9 = arith.constant 0 : index
    %c0_10 = arith.constant 0 : index
    %16 = vector.load %arg5[%c0_9, %c0_10] : memref<8x128xf32, #tpu.memory_space<vmem>>, vector<8x128xf32>
    %17 = arith.addf %9, %5 : vector<16x128xf32>
    %18 = vector.shape_cast %17 : vector<16x128xf32> to vector<2x8x128xf32>
    %cst_11 = arith.constant dense<0.000000e+00> : vector<8x128xf32>
    %19 = vector.multi_reduction <add>, %18, %cst_11 [0] : vector<2x8x128xf32> to vector<8x128xf32>
    %20 = arith.addf %16, %19 : vector<8x128xf32>
    %c0_12 = arith.constant 0 : index
    %c0_13 = arith.constant 0 : index
    %21 = vector.load %arg5[%c0_12, %c0_13] : memref<8x128xf32, #tpu.memory_space<vmem>>, vector<8x128xf32>
    tpu.vector_store %arg5[%c0_12, %c0_13], %20 {strides = array<i32>} : memref<8x128xf32, #tpu.memory_space<vmem>>, vector<8x128xf32>,
    return
  }
  func.func @transform_0(%arg0: i32, %arg1: memref<1xf32, #tpu.memory_space<smem>>) -> (i32, i32) {
    %c0_i32 = arith.constant 0 : i32
    %c0_i32_0 = arith.constant 0 : i32
    return %arg0, %c0_i32 : i32, i32
  }
  func.func @transform_1(%arg0: i32, %arg1: memref<1xf32, #tpu.memory_space<smem>>) -> (i32, i32) {
    %c0_i32 = arith.constant 0 : i32
    %c0_i32_0 = arith.constant 0 : i32
    return %arg0, %c0_i32 : i32, i32
  }
  func.func @transform_2(%arg0: i32, %arg1: memref<1xf32, #tpu.memory_space<smem>>) -> (i32, i32) {
    %c0_i32 = arith.constant 0 : i32
    %c0_i32_0 = arith.constant 0 : i32
    %c0_i32_1 = arith.constant 0 : i32
    return %c0_i32, %c0_i32_0 : i32, i32
  }
  func.func @transform_3(%arg0: i32, %arg1: memref<1xf32, #tpu.memory_space<smem>>) -> (i32, i32) {
    %c0_i32 = arith.constant 0 : i32
    %c0_i32_0 = arith.constant 0 : i32
    %c0_i32_1 = arith.constant 0 : i32
    return %c0_i32, %c0_i32_0 : i32, i32
  }
}

</mosaic_0001>

<llo_original>
// kernel: dice_partial_sums.1
$region0: #{dice_partial_sums.1}
  #allocation0 [shape = 'u32[]', space=smem, size = 0x4, offset = 0x4, fixed_abs, tag = 'smem constant byte address 0x4 - core index']
  #allocation1 [shape = 'u32[144,128]{1,0:T(1,128)}', space=vmem, size = 0x12000, scoped, tag = 'internal scratch']
  #allocation2 [shape = 's32[1]{0}', space=sflag, size = 0x4, scoped, tag = 'scoped memory for dice_partial_sums.1']
  #allocation3 [shape = 'f32[1]{0:T(128)S(6)}', space=smem, size = 0x200, scoped, tag = 'prefetched SMEM operand 0']
  %s0 = inlined_call_operand.<no memory space> [shape: f32[1], index: 0, kind: input, shape index: {}]
  %s1 = inlined_call_operand.vmem [shape: f32[16,128], index: 1, kind: input, shape index: {}]
  %s2 = inlined_call_operand.vmem [shape: f32[16,128], index: 2, kind: input, shape index: {}]
  %s3 = inlined_call_operand.vmem [shape: f32[8,128], index: 3, kind: output, shape index: {0}]
  %s4 = inlined_call_operand.vmem [shape: f32[8,128], index: 4, kind: output, shape index: {1}]
  %5 = xla_tuple %s3, %s4
  %s6 = sld [smem:[#allocation0]]
  $region30: #{dice_partial_sums.1} parent=0
    _
  %s8 = ssub.s32 1, %s6
  %s9 = scalar_select 0, %s8, %s6
  %10 = sst [smem:[#allocation3]] %s0
  // Predicated region
  $region2: #{dice_partial_sums.1} parent=0 // pred_check
    _
  $region3: #{dice_partial_sums.1} parent=0 // pred_check_branch
    %12 = sbr.rel (0) target = $region5
  $region4: #{dice_partial_sums.1} parent=0 // pred_region
    _
  $region5: #{dice_partial_sums.1} parent=0 // pred_fallthru
    _
  // Predicated region
  $region6: #{dice_partial_sums.1} parent=0 // pred_check
    _
  $region7: #{dice_partial_sums.1} parent=0 // pred_check_branch
    %14 = sbr.rel (0) target = $region9
  $region8: #{dice_partial_sums.1} parent=0 // pred_region
    _
  $region9: #{dice_partial_sums.1} parent=0 // pred_fallthru
    _
  %p15 = scmp.eq.s32.totalorder 0, 0
  // Predicated region
  $region10: #{dice_partial_sums.1} parent=0 // pred_check
    %p16 = pneg %p15
  $region11: #{dice_partial_sums.1} parent=0 // pred_check_branch
    %18 = sbr.rel (%p16) target = $region13
  $region12: #{dice_partial_sums.1} parent=0 // pred_region
    %19 = vst [vmem:[%s3] sm:$0xff] 0.0
    %20 = vst [vmem:[%s4] sm:$0xff] 0.0
  $region13: #{dice_partial_sums.1} parent=0 // pred_fallthru
    _
  %s21 = sld [smem:[#allocation3]]
  %v22 = vld [vmem:[%s1] sm:$0xff]
  %v23 = vld [vmem:[%s1 + $0x8] sm:$0xff]
  %v24 = vld [vmem:[%s2] sm:$0xff]
  %v25 = vld [vmem:[%s2 + $0x8] sm:$0xff]
  %v26 = vstv %s21
  %vm27 = vcmp.ge.f32.partialorder %v22, %v26
  %vm28 = vcmp.ge.f32.partialorder %v23, %v26
  %v29 = vsel %vm27, 1, 0
  %v30 = vsel %vm28, 1, 0
  %v31 = vcvt.s32.f32 %v29
  %v32 = vcvt.s32.f32 %v30
  %v33 = vld [vmem:[%s3] sm:$0xff]
  %v34 = vmul.f32 %v31, %v24
  %v35 = vmul.f32 %v32, %v25
  %v36 = vadd.f32 %v34, %v35
  %v37 = vadd.f32 %v33, %v36
  %38 = vst [vmem:[%s3] sm:$0xff] %v37
  %v39 = vld [vmem:[%s4] sm:$0xff]
  %v40 = vadd.f32 %v31, %v24
  %v41 = vadd.f32 %v32, %v25
  %v42 = vadd.f32 %v40, %v41
  %v43 = vadd.f32 %v39, %v42
  %44 = vst [vmem:[%s4] sm:$0xff] %v43
  // Predicated region
  $region14: #{dice_partial_sums.1} parent=0 // pred_check
    _
  $region15: #{dice_partial_sums.1} parent=0 // pred_check_branch
    %46 = sbr.rel (0) target = $region17
  $region16: #{dice_partial_sums.1} parent=0 // pred_region
    _
  $region17: #{dice_partial_sums.1} parent=0 // pred_fallthru
    _
  // Predicated region
  $region18: #{dice_partial_sums.1} parent=0 // pred_check
    _
  $region19: #{dice_partial_sums.1} parent=0 // pred_check_branch
    %48 = sbr.rel (0) target = $region21
  $region20: #{dice_partial_sums.1} parent=0 // pred_region
    _
  $region21: #{dice_partial_sums.1} parent=0 // pred_fallthru
    _
  // Predicated region
  $region22: #{dice_partial_sums.1} parent=0 // pred_check
    _
  $region23: #{dice_partial_sums.1} parent=0 // pred_check_branch
    %50 = sbr.rel (0) target = $region25
  $region24: #{dice_partial_sums.1} parent=0 // pred_region
    _
  $region25: #{dice_partial_sums.1} parent=0 // pred_fallthru
    _
  // Predicated region
  $region26: #{dice_partial_sums.1} parent=0 // pred_check
    _
  $region27: #{dice_partial_sums.1} parent=0 // pred_check_branch
    %52 = sbr.rel (0) target = $region29
  $region28: #{dice_partial_sums.1} parent=0 // pred_region
    _
  $region29: #{dice_partial_sums.1} parent=0 // pred_fallthru
    _

</llo_original>
